<compile_context>
chip_gen: v7x
topology: tpu7x:2x2x1
jax: 0.10.0
libtpu: 0.0.40
codegen_flags: <defaults>
</compile_context>

<pallas_src>
import functools

import numpy as np
import jax
import jax.numpy as jnp
from jax.experimental import pallas as pl
from jax.experimental.pallas import tpu as pltpu

HEAD_LANES = 128  # fused (policy | value) head zero-padded to one full lane tile


def actor_critic_kernel(x_ref, w1_ref, b1_ref, w2_ref, b2_ref,
                        wh_ref, bh_ref, out_ref):
    x = x_ref[...]
    w1 = w1_ref[...]
    state_dim = x.shape[1]

    # Layer 1 (K = state_dim, tiny): VPU broadcast multiply-adds instead of an
    # almost-empty MXU pass; overlaps with MXU work of neighboring tiles.
    acc = b1_ref[...] + x[:, 0:1] * w1[0:1, :]
    for k in range(1, state_dim):
        acc = acc + x[:, k:k + 1] * w1[k:k + 1, :]
    h1 = jnp.tanh(acc)

    # Layer 2: hidden x hidden -> MXU, tanh on EUP.
    h2 = jnp.tanh(
        jnp.dot(h1, w2_ref[...], preferred_element_type=jnp.float32)
        + b2_ref[...]
    )

    # Fused (policy | value | zero-pad) head: one matmul, one lane-dense
    # (TB, 128) store.
    out_ref[...] = (
        jnp.dot(h2, wh_ref[...], preferred_element_type=jnp.float32)
        + bh_ref[...]
    )


def _round_up(x, m):
    return ((x + m - 1) // m) * m


def prepare_fused_head(params, head_lanes=HEAD_LANES):
    """Precompute (once, at init / param-update time) the fused, lane-padded head.

    Returns (kernel_params, action_dim).
    """
    action_dim = params["wp"].shape[1]
    head_dim = action_dim + 1
    assert head_dim <= head_lanes
    wh = jnp.concatenate([params["wp"], params["wv"]], axis=1)
    bh = jnp.concatenate([params["bp"], params["bv"]], axis=1)
    wh = jnp.pad(wh, ((0, 0), (0, head_lanes - head_dim)))
    bh = jnp.pad(bh, ((0, 0), (0, head_lanes - head_dim)))
    kernel_params = {
        "w1": params["w1"], "b1": params["b1"],
        "w2": params["w2"], "b2": params["b2"],
        "wh": wh, "bh": bh,
    }
    return kernel_params, action_dim


@functools.partial(jax.jit, static_argnames=("action_dim", "tb_max"))
def actor_critic_forward(x, kparams, *, action_dim, tb_max=1024):
    """Fused ActorCritic forward. Returns (logits [B, action_dim], value [B, 1])."""
    B, state_dim = x.shape
    hidden = kparams["w1"].shape[1]
    head_lanes = kparams["wh"].shape[1]

    # Batch tile: multiple of 8 (sublane granularity), capped at tb_max.
    # No padding of x / slicing of the output: the partial tail block (if any)
    # is masked by Pallas (padded reads, dropped OOB writes).
    TB = min(tb_max, _round_up(B, 8))
    grid = (pl.cdiv(B, TB),)

    def const_spec(arr):
        # Weights/biases: full-array block, constant index_map -> loaded once,
        # resident in VMEM across batch tiles. All params must be 2-D.
        assert arr.ndim == 2, "const_spec expects 2-D params (biases as (1, N))"
        return pl.BlockSpec(arr.shape, lambda i: (0, 0))

    cost = pl.CostEstimate(
        flops=2 * B * (state_dim * hidden + hidden * hidden
                       + hidden * head_lanes),
        transcendentals=2 * B * hidden,
        bytes_accessed=4 * (B * state_dim + B * head_lanes
                            + state_dim * hidden + hidden * hidden
                            + hidden * head_lanes + 2 * hidden + head_lanes),
    )

    fused = pl.pallas_call(
        actor_critic_kernel,
        out_shape=jax.ShapeDtypeStruct((B, head_lanes), jnp.float32),
        grid=grid,
        in_specs=[
            pl.BlockSpec((TB, state_dim), lambda i: (i, 0)),
            const_spec(kparams["w1"]), const_spec(kparams["b1"]),
            const_spec(kparams["w2"]), const_spec(kparams["b2"]),
            const_spec(kparams["wh"]), const_spec(kparams["bh"]),
        ],
        out_specs=pl.BlockSpec((TB, head_lanes), lambda i: (i, 0)),
        compiler_params=pltpu.CompilerParams(
            dimension_semantics=("parallel",)),
        cost_estimate=cost,
    )(x, kparams["w1"], kparams["b1"], kparams["w2"], kparams["b2"],
      kparams["wh"], kparams["bh"])

    logits = fused[:, :action_dim]
    value = fused[:, action_dim:action_dim + 1]
    return logits, value


def _orthogonal(key, out_dim, in_dim, gain):
    """Orthogonal init matching nn.init.orthogonal_ on a (out, in) weight;
    returned transposed to (in, out) for the x @ W layout."""
    w = jax.nn.initializers.orthogonal(scale=gain)(
        key, (out_dim, in_dim), jnp.float32)
    return jnp.transpose(w)  # (in, out)


def init_actor_critic_params(key, state_dim, action_dim, hidden_dim=64):
    k1, k2, k3, k4 = jax.random.split(key, 4)
    g = float(np.sqrt(2.0))
    params = {
        "w1": _orthogonal(k1, hidden_dim, state_dim, g),
        "b1": jnp.zeros((1, hidden_dim), jnp.float32),
        "w2": _orthogonal(k2, hidden_dim, hidden_dim, g),
        "b2": jnp.zeros((1, hidden_dim), jnp.float32),
        # policy head: smaller gain (0.01) as in the PyTorch _init_weights
        "wp": _orthogonal(k3, action_dim, hidden_dim, 0.01),
        "bp": jnp.zeros((1, action_dim), jnp.float32),
        "wv": _orthogonal(k4, 1, hidden_dim, g),
        "bv": jnp.zeros((1, 1), jnp.float32),
    }
    return params


def reference_forward(x, params):
    """Pure-JAX reference for correctness check."""
    h1 = jnp.tanh(x @ params["w1"] + params["b1"])
    h2 = jnp.tanh(h1 @ params["w2"] + params["b2"])
    logits = h2 @ params["wp"] + params["bp"]
    value = h2 @ params["wv"] + params["bv"]
    return logits, value


if __name__ == "__main__":
    # CartPole-like dims: state_dim=4, action_dim=2, hidden_dim=64.
    state_dim, action_dim, hidden_dim = 4, 2, 64

    key = jax.random.PRNGKey(0)
    pkey, xk1, xk2, xk3 = jax.random.split(key, 4)
    params = init_actor_critic_params(pkey, state_dim, action_dim, hidden_dim)
    kparams, action_dim = prepare_fused_head(params)

    # Case 1: tiny, aligned inference-style batch (single grid step).
    x1 = jax.random.normal(xk1, (8, state_dim), jnp.float32)
    l1, v1 = actor_critic_forward(x1, kparams, action_dim=action_dim)
    jax.block_until_ready((l1, v1))
    rl1, rv1 = reference_forward(x1, params)
    assert l1.shape == (8, action_dim) and v1.shape == (8, 1)
    np.testing.assert_allclose(np.asarray(l1), np.asarray(rl1), rtol=1e-5, atol=1e-5)
    np.testing.assert_allclose(np.asarray(v1), np.asarray(rv1), rtol=1e-5, atol=1e-5)

    # Case 2: multi-tile grid with a partial (Pallas-masked) tail block.
    x2 = jax.random.normal(xk2, (200, state_dim), jnp.float32)
    l2, v2 = actor_critic_forward(x2, kparams, action_dim=action_dim, tb_max=128)
    jax.block_until_ready((l2, v2))
    rl2, rv2 = reference_forward(x2, params)
    assert l2.shape == (200, action_dim) and v2.shape == (200, 1)
    np.testing.assert_allclose(np.asarray(l2), np.asarray(rl2), rtol=1e-5, atol=1e-5)
    np.testing.assert_allclose(np.asarray(v2), np.asarray(rv2), rtol=1e-5, atol=1e-5)

    # Case 3: batch not a multiple of 8 (single block larger than B -> OOB mask).
    x3 = jax.random.normal(xk3, (37, state_dim), jnp.float32)
    l3, v3 = actor_critic_forward(x3, kparams, action_dim=action_dim)
    jax.block_until_ready((l3, v3))
    rl3, rv3 = reference_forward(x3, params)
    assert l3.shape == (37, action_dim) and v3.shape == (37, 1)
    np.testing.assert_allclose(np.asarray(l3), np.asarray(rl3), rtol=1e-5, atol=1e-5)
    np.testing.assert_allclose(np.asarray(v3), np.asarray(rv3), rtol=1e-5, atol=1e-5)

    # TODO(synk): get_action_and_value (Categorical sampling / log_prob /
    # entropy) is host-side RL glue; if single-step B~8 inference becomes the
    # hot path, fuse Gumbel-max sampling in-kernel via pltpu.prng_random_bits.
    print("KERNEL_OK")
</pallas_src>

<mosaic_0001>
module attributes {stable_mosaic.version = 11 : i64} {
  func.func @actor_critic_kernel(%arg0: i32, %arg1: memref<8x4xf32, #tpu.memory_space<vmem>>, %arg2: memref<4x64xf32, #tpu.memory_space<vmem>>, %arg3: memref<1x64xf32, #tpu.memory_space<vmem>>, %arg4: memref<64x64xf32, #tpu.memory_space<vmem>>, %arg5: memref<1x64xf32, #tpu.memory_space<vmem>>, %arg6: memref<64x128xf32, #tpu.memory_space<vmem>>, %arg7: memref<1x128xf32, #tpu.memory_space<vmem>>, %arg8: memref<8x128xf32, #tpu.memory_space<vmem>>) attributes {dimension_semantics = [#tpu.dimension_semantics<parallel>], iteration_bounds = array<i64: 1>, scalar_prefetch = 0 : i64, scratch_operands = 0 : i64, tpu.core_type = #tpu.core_type<tc>, window_params = [{transform_indices = @transform_0, window_bounds = array<i64: 8, 4>}, {pipeline_mode = #tpu.pipeline_mode<synchronous>, transform_indices = @transform_1, window_bounds = array<i64: 4, 64>}, {pipeline_mode = #tpu.pipeline_mode<synchronous>, transform_indices = @transform_2, window_bounds = array<i64: 1, 64>}, {pipeline_mode = #tpu.pipeline_mode<synchronous>, transform_indices = @transform_3, window_bounds = array<i64: 64, 64>}, {pipeline_mode = #tpu.pipeline_mode<synchronous>, transform_indices = @transform_4, window_bounds = array<i64: 1, 64>}, {pipeline_mode = #tpu.pipeline_mode<synchronous>, transform_indices = @transform_5, window_bounds = array<i64: 64, 128>}, {pipeline_mode = #tpu.pipeline_mode<synchronous>, transform_indices = @transform_6, window_bounds = array<i64: 1, 128>}, {transform_indices = @transform_7, window_bounds = array<i64: 8, 128>}]} {
    %c0 = arith.constant 0 : index
    %c0_0 = arith.constant 0 : index
    %0 = vector.load %arg1[%c0, %c0_0] : memref<8x4xf32, #tpu.memory_space<vmem>>, vector<8x4xf32>
    %c0_1 = arith.constant 0 : index
    %c0_2 = arith.constant 0 : index
    %1 = vector.load %arg2[%c0_1, %c0_2] : memref<4x64xf32, #tpu.memory_space<vmem>>, vector<4x64xf32>
    %c0_3 = arith.constant 0 : index
    %c0_4 = arith.constant 0 : index
    %2 = vector.load %arg3[%c0_3, %c0_4] : memref<1x64xf32, #tpu.memory_space<vmem>>, vector<1x64xf32>
    %3 = vector.extract_strided_slice %0 {offsets = [0, 0], sizes = [8, 1], strides = [1, 1]} : vector<8x4xf32> to vector<8x1xf32>
    %4 = vector.extract_strided_slice %1 {offsets = [0, 0], sizes = [1, 64], strides = [1, 1]} : vector<4x64xf32> to vector<1x64xf32>
    %5 = vector.broadcast %3 : vector<8x1xf32> to vector<8x64xf32>
    %6 = vector.broadcast %4 : vector<1x64xf32> to vector<8x64xf32>
    %7 = arith.mulf %5, %6 : vector<8x64xf32>
    %8 = vector.broadcast %2 : vector<1x64xf32> to vector<8x64xf32>
    %9 = arith.addf %8, %7 : vector<8x64xf32>
    %10 = vector.extract_strided_slice %0 {offsets = [0, 1], sizes = [8, 1], strides = [1, 1]} : vector<8x4xf32> to vector<8x1xf32>
    %11 = vector.extract_strided_slice %1 {offsets = [1, 0], sizes = [1, 64], strides = [1, 1]} : vector<4x64xf32> to vector<1x64xf32>
    %12 = vector.broadcast %10 : vector<8x1xf32> to vector<8x64xf32>
    %13 = vector.broadcast %11 : vector<1x64xf32> to vector<8x64xf32>
    %14 = arith.mulf %12, %13 : vector<8x64xf32>
    %15 = arith.addf %9, %14 : vector<8x64xf32>
    %16 = vector.extract_strided_slice %0 {offsets = [0, 2], sizes = [8, 1], strides = [1, 1]} : vector<8x4xf32> to vector<8x1xf32>
    %17 = vector.extract_strided_slice %1 {offsets = [2, 0], sizes = [1, 64], strides = [1, 1]} : vector<4x64xf32> to vector<1x64xf32>
    %18 = vector.broadcast %16 : vector<8x1xf32> to vector<8x64xf32>
    %19 = vector.broadcast %17 : vector<1x64xf32> to vector<8x64xf32>
    %20 = arith.mulf %18, %19 : vector<8x64xf32>
    %21 = arith.addf %15, %20 : vector<8x64xf32>
    %22 = vector.extract_strided_slice %0 {offsets = [0, 3], sizes = [8, 1], strides = [1, 1]} : vector<8x4xf32> to vector<8x1xf32>
    %23 = vector.extract_strided_slice %1 {offsets = [3, 0], sizes = [1, 64], strides = [1, 1]} : vector<4x64xf32> to vector<1x64xf32>
    %24 = vector.broadcast %22 : vector<8x1xf32> to vector<8x64xf32>
    %25 = vector.broadcast %23 : vector<1x64xf32> to vector<8x64xf32>
    %26 = arith.mulf %24, %25 : vector<8x64xf32>
    %27 = arith.addf %21, %26 : vector<8x64xf32>
    %28 = math.tanh %27 : vector<8x64xf32>
    %c0_5 = arith.constant 0 : index
    %c0_6 = arith.constant 0 : index
    %29 = vector.load %arg4[%c0_5, %c0_6] : memref<64x64xf32, #tpu.memory_space<vmem>>, vector<64x64xf32>
    %cst = arith.constant dense<0.000000e+00> : vector<8x64xf32>
    %30 = tpu.matmul %28, %29, %cst {dimension_numbers = #tpu.dot_dimension_numbers<[1], [0], [0], [1], [0, 0, 1, 1], [], []>} : vector<8x64xf32>, vector<64x64xf32>, vector<8x64xf32> -> vector<8x64xf32>
    %c0_7 = arith.constant 0 : index
    %c0_8 = arith.constant 0 : index
    %31 = vector.load %arg5[%c0_7, %c0_8] : memref<1x64xf32, #tpu.memory_space<vmem>>, vector<1x64xf32>
    %32 = vector.broadcast %31 : vector<1x64xf32> to vector<8x64xf32>
    %33 = arith.addf %30, %32 : vector<8x64xf32>
    %34 = math.tanh %33 : vector<8x64xf32>
    %c0_9 = arith.constant 0 : index
    %c0_10 = arith.constant 0 : index
    %35 = vector.load %arg6[%c0_9, %c0_10] : memref<64x128xf32, #tpu.memory_space<vmem>>, vector<64x128xf32>
    %cst_11 = arith.constant dense<0.000000e+00> : vector<8x128xf32>
    %36 = tpu.matmul %34, %35, %cst_11 {dimension_numbers = #tpu.dot_dimension_numbers<[1], [0], [0], [1], [0, 0, 1, 1], [], []>} : vector<8x64xf32>, vector<64x128xf32>, vector<8x128xf32> -> vector<8x128xf32>
    %c0_12 = arith.constant 0 : index
    %c0_13 = arith.constant 0 : index
    %37 = vector.load %arg7[%c0_12, %c0_13] : memref<1x128xf32, #tpu.memory_space<vmem>>, vector<1x128xf32>
    %38 = vector.broadcast %37 : vector<1x128xf32> to vector<8x128xf32>
    %39 = arith.addf %36, %38 : vector<8x128xf32>
    %c0_14 = arith.constant 0 : index
    %c0_15 = arith.constant 0 : index
    %40 = vector.load %arg8[%c0_14, %c0_15] : memref<8x128xf32, #tpu.memory_space<vmem>>, vector<8x128xf32>
    tpu.vector_store %arg8[%c0_14, %c0_15], %39 {strides = array<i32>} : memref<8x128xf32, #tpu.memory_space<vmem>>, vector<8x128xf32>,
    return
  }
  func.func @transform_0(%arg0: i32) -> (i32, i32) {
    %c0_i32 = arith.constant 0 : i32
    %c0_i32_0 = arith.constant 0 : i32
    return %arg0, %c0_i32 : i32, i32
  }
  func.func @transform_1(%arg0: i32) -> (i32, i32) {
    %c0_i32 = arith.constant 0 : i32
    %c0_i32_0 = arith.constant 0 : i32
    %c0_i32_1 = arith.constant 0 : i32
    return %c0_i32, %c0_i32_0 : i32, i32
  }
  func.func @transform_2(%arg0: i32) -> (i32, i32) {
    %c0_i32 = arith.constant 0 : i32
    %c0_i32_0 = arith.constant 0 : i32
    %c0_i32_1 = arith.constant 0 : i32
    return %c0_i32, %c0_i32_0 : i32, i32
  }
  func.func @transform_3(%arg0: i32) -> (i32, i32) {
    %c0_i32 = arith.constant 0 : i32
    %c0_i32_0 = arith.constant 0 : i32
    %c0_i32_1 = arith.constant 0 : i32
    return %c0_i32, %c0_i32_0 : i32, i32
  }
  func.func @transform_4(%arg0: i32) -> (i32, i32) {
    %c0_i32 = arith.constant 0 : i32
    %c0_i32_0 = arith.constant 0 : i32
    %c0_i32_1 = arith.constant 0 : i32
    return %c0_i32, %c0_i32_0 : i32, i32
  }
  func.func @transform_5(%arg0: i32) -> (i32, i32) {
    %c0_i32 = arith.constant 0 : i32
    %c0_i32_0 = arith.constant 0 : i32
    %c0_i32_1 = arith.constant 0 : i32
    return %c0_i32, %c0_i32_0 : i32, i32
  }
  func.func @transform_6(%arg0: i32) -> (i32, i32) {
    %c0_i32 = arith.constant 0 : i32
    %c0_i32_0 = arith.constant 0 : i32
    %c0_i32_1 = arith.constant 0 : i32
    return %c0_i32, %c0_i32_0 : i32, i32
  }
  func.func @transform_7(%arg0: i32) -> (i32, i32) {
    %c0_i32 = arith.constant 0 : i32
    %c0_i32_0 = arith.constant 0 : i32
    return %arg0, %c0_i32 : i32, i32
  }
}

</mosaic_0001>

<llo_original>
// kernel: actor_critic_forward.1
$region0: #{actor_critic_forward.1}
  #allocation0 [shape = 'u32[]', space=smem, size = 0x4, offset = 0x4, fixed_abs, tag = 'smem constant byte address 0x4 - core index']
  #allocation1 [shape = 'u32[144,128]{1,0:T(1,128)}', space=vmem, size = 0x12000, scoped, tag = 'internal scratch']
  %s0 = inlined_call_operand.vmem [shape: f32[8,4], index: 0, kind: input, shape index: {}]
  %s1 = inlined_call_operand.vmem [shape: f32[4,64], index: 1, kind: input, shape index: {}]
  %s2 = inlined_call_operand.vmem [shape: f32[1,64], index: 2, kind: input, shape index: {}]
  %s3 = inlined_call_operand.hbm [shape: f32[64,64], index: 3, kind: input, shape index: {}]
  %s4 = inlined_call_operand.vmem [shape: f32[1,64], index: 4, kind: input, shape index: {}]
  %s5 = inlined_call_operand.hbm [shape: f32[64,128], index: 5, kind: input, shape index: {}]
  %s6 = inlined_call_operand.vmem [shape: f32[1,128], index: 6, kind: input, shape index: {}]
  %s7 = inlined_call_operand.vmem [shape: f32[8,128], index: 7, kind: output, shape index: {}]
  %s8 = sld [smem:[#allocation0]]
  $region46: #{actor_critic_forward.1} parent=0
    _
  %s10 = ssub.s32 1, %s8
  %s11 = scalar_select 0, %s10, %s8
  $region1: #{actor_critic_forward.1} parent=0
    #allocation2 [shape = 'u8[32768]{0}', space=vmem, size = 0x8000, scoped, tag = 'input window, operand 3, single buffered']
    #allocation3 [shape = 's32[1]{0}', space=sflag, size = 0x4, scoped, tag = 'scoped memory for actor_critic_forward.1']
    #allocation4 [shape = 'u8[32768]{0}', space=vmem, size = 0x8000, scoped, tag = 'input window, operand 5, single buffered']
    #allocation5 [shape = 's32[1]{0}', space=sflag, size = 0x4, scoped, tag = 'scoped memory for actor_critic_forward.1']
    %12 = vsyncpa [#allocation3], 0
    %13 = vsyncpa [#allocation5], 0
    // Predicated region
    $region2: #{actor_critic_forward.1} parent=1 // pred_check
      _
    $region3: #{actor_critic_forward.1} parent=1 // pred_check_branch
      %15 = sbr.rel (0) target = $region5
    $region4: #{actor_critic_forward.1} parent=1 // pred_region
      _
    $region5: #{actor_critic_forward.1} parent=1 // pred_fallthru
      _
    // Predicated region
    $region6: #{actor_critic_forward.1} parent=1 // pred_check
      _
    $region7: #{actor_critic_forward.1} parent=1 // pred_check_branch
      %17 = sbr.rel (0) target = $region9
    $region8: #{actor_critic_forward.1} parent=1 // pred_region
      _
    $region9: #{actor_critic_forward.1} parent=1 // pred_fallthru
      _
    // Predicated region
    $region10: #{actor_critic_forward.1} parent=1 // pred_check
      _
    $region11: #{actor_critic_forward.1} parent=1 // pred_check_branch
      %19 = sbr.rel (0) target = $region13
    $region12: #{actor_critic_forward.1} parent=1 // pred_region
      _
    $region13: #{actor_critic_forward.1} parent=1 // pred_fallthru
      _
    // Predicated region
    $region14: #{actor_critic_forward.1} parent=1 // pred_check
      _
    $region15: #{actor_critic_forward.1} parent=1 // pred_check_branch
      %21 = sbr.rel (0) target = $region17
    $region16: #{actor_critic_forward.1} parent=1 // pred_region
      %s23 = ssub.s32 1024, 1024
      %24 = vsyncadd [#allocation3], %s23
      %s25 = sshll.u32 [#allocation2], 4
      %s26 = int_to_ptr.vmem [resolvable:$true] %s25
      %31 = dma.hbm_to_vmem [thread:$0]  %s3, 1024, %s26, [#allocation3], 128, 128, 8
    $region17: #{actor_critic_forward.1} parent=1 // pred_fallthru
      _
    // Predicated region
    $region18: #{actor_critic_forward.1} parent=1 // pred_check
      _
    $region19: #{actor_critic_forward.1} parent=1 // pred_check_branch
      %33 = sbr.rel (0) target = $region21
    $region20: #{actor_critic_forward.1} parent=1 // pred_region
      _
    $region21: #{actor_critic_forward.1} parent=1 // pred_fallthru
      _
    // Predicated region
    $region22: #{actor_critic_forward.1} parent=1 // pred_check
      _
    $region23: #{actor_critic_forward.1} parent=1 // pred_check_branch
      %35 = sbr.rel (0) target = $region25
    $region24: #{actor_critic_forward.1} parent=1 // pred_region
      %s37 = ssub.s32 1024, 1024
      %38 = vsyncadd [#allocation5], %s37
      %s39 = sshll.u32 [#allocation4], 4
      %s40 = int_to_ptr.vmem [resolvable:$true] %s39
      %45 = dma.hbm_to_vmem [thread:$0]  %s5, 1024, %s40, [#allocation5], 128, 128, 8
    $region25: #{actor_critic_forward.1} parent=1 // pred_fallthru
      _
    // Predicated region
    $region26: #{actor_critic_forward.1} parent=1 // pred_check
      _
    $region27: #{actor_critic_forward.1} parent=1 // pred_check_branch
      %47 = sbr.rel (0) target = $region29
    $region28: #{actor_critic_forward.1} parent=1 // pred_region
      _
    $region29: #{actor_critic_forward.1} parent=1 // pred_fallthru
      _
    // Predicated region
    $region30: #{actor_critic_forward.1} parent=1 // pred_check
      _
    $region31: #{actor_critic_forward.1} parent=1 // pred_check_branch
      %49 = sbr.rel (0) target = $region33
    $region32: #{actor_critic_forward.1} parent=1 // pred_region
      %50 = dma.done [#allocation3], 1024
    $region33: #{actor_critic_forward.1} parent=1 // pred_fallthru
      _
    // Predicated region
    $region34: #{actor_critic_forward.1} parent=1 // pred_check
      _
    $region35: #{actor_critic_forward.1} parent=1 // pred_check_branch
      %52 = sbr.rel (0) target = $region37
    $region36: #{actor_critic_forward.1} parent=1 // pred_region
      %53 = dma.done [#allocation5], 1024
    $region37: #{actor_critic_forward.1} parent=1 // pred_fallthru
      _
    %v54 = vld [vmem:[%s0] sm:$0xff]
    %v55 = vld [vmem:[%s1] sm:$0xf]
    %v56 = vld [vmem:[%s2] sm:$0x1]
    %58 = vset.pattern.permute.xlu0 0
    %59 = vperm.xlu0 %58, %v54
    %v60 = vpop.permute.xlu0 %59
    %v62 = vlaneseq
    %v63 = vshrl.u32 %v62, 7
    %v64 = vsub.s32 0, %v63
    %v65 = vrot.slane %v55, %v64
    %v66 = vmul.f32 %v60, %v65
    %v68 = vlaneseq
    %v69 = vshrl.u32 %v68, 7
    %v70 = vsub.s32 0, %v69
    %v71 = vrot.slane %v56, %v70
    %v73 = vadd.f32 %v71, %v66
    %74 = vset.pattern.permute.xlu0 1
    %75 = vperm.xlu0 %74, %v54
    %v76 = vpop.permute.xlu0 %75
    %v78 = vlaneseq
    %v79 = vshrl.u32 %v78, 7
    %v80 = vsub.s32 1, %v79
    %v81 = vrot.slane %v55, %v80
    %v82 = vmul.f32 %v76, %v81
    %v83 = vadd.f32 %v73, %v82
    %84 = vset.pattern.permute.xlu0 2
    %85 = vperm.xlu0 %84, %v54
    %v86 = vpop.permute.xlu0 %85
    %v88 = vlaneseq
    %v89 = vshrl.u32 %v88, 7
    %v90 = vsub.s32 2, %v89
    %v91 = vrot.slane %v55, %v90
    %v92 = vmul.f32 %v86, %v91
    %v93 = vadd.f32 %v83, %v92
    %94 = vset.pattern.permute.xlu0 3
    %95 = vperm.xlu0 %94, %v54
    %v96 = vpop.permute.xlu0 %95
    %v98 = vlaneseq
    %v99 = vshrl.u32 %v98, 7
    %v100 = vsub.s32 3, %v99
    %v101 = vrot.slane %v55, %v100
    %v102 = vmul.f32 %v96, %v101
    %v103 = vadd.f32 %v93, %v102
    %v104 = vtanh.pop %v103
    %v105 = vld [vmem:[#allocation2] sm:$0xff]
    %v106 = vld [vmem:[#allocation2 + $0x8] sm:$0xff]
    %v107 = vld [vmem:[#allocation2 + $0x10] sm:$0xff]
    %v108 = vld [vmem:[#allocation2 + $0x18] sm:$0xff]
    %v109 = vld [vmem:[#allocation2 + $0x20] sm:$0xff]
    %v110 = vld [vmem:[#allocation2 + $0x28] sm:$0xff]
    %v111 = vld [vmem:[#allocation2 + $0x30] sm:$0xff]
    %v112 = vld [vmem:[#allocation2 + $0x38] sm:$0xff]
    %v113 = vld [vmem:[%s4] sm:$0x1]
    %v115 = vlaneseq
    %v116 = vshrl.u32 %v115, 7
    %v117 = vsub.s32 0, %v116
    %v118 = vrot.slane %v113, %v117
    %vm120 = vcmask 523264
    %v122 = vsel %vm120, %v104, 0
    %124 = vmatprep.subr.mxu0 0.0
    %125 = vmatpush1.msra.mxu0 %v105
    %126 = vmatprep.subr.mxu0 0.0
    %127 = vmatpush1.msra.mxu0 %v106
    %128 = vmatprep.subr.mxu0 0.0
    %129 = vmatpush1.msra.mxu0 %v107
    %130 = vmatprep.subr.mxu0 0.0
    %131 = vmatpush1.msra.mxu0 %v108
    %132 = vmatprep.subr.mxu0 0.0
    %133 = vmatpush1.msra.mxu0 %v109
    %134 = vmatprep.subr.mxu0 0.0
    %135 = vmatpush1.msra.mxu0 %v110
    %136 = vmatprep.subr.mxu0 0.0
    %137 = vmatpush1.msra.mxu0 %v111
    %138 = vmatprep.subr.mxu0 0.0
    %139 = vmatpush1.msra.mxu0 %v112
    %140 = vmatprep.subr.mxu0 0.0
    %141 = vmatpush1.msra.mxu0 0.0
    %142 = vmatprep.subr.mxu0 0.0
    %143 = vmatpush1.msra.mxu0 0.0
    %144 = vmatprep.subr.mxu0 0.0
    %145 = vmatpush1.msra.mxu0 0.0
    %146 = vmatprep.subr.mxu0 0.0
    %147 = vmatpush1.msra.mxu0 0.0
    %148 = vmatprep.subr.mxu0 0.0
    %149 = vmatpush1.msra.mxu0 0.0
    %150 = vmatprep.subr.mxu0 0.0
    %151 = vmatpush1.msra.mxu0 0.0
    %152 = vmatprep.subr.mxu0 0.0
    %153 = vmatpush1.msra.mxu0 0.0
    %154 = vmatprep.subr.mxu0 0.0
    %155 = vmatpush1.msra.mxu0 0.0
    %156 = vmatprep.subr.mxu0 0.0
    %157 = vmatpush1.msra.mxu0 0.0
    %158 = vmatprep.subr.mxu0 0.0
    %159 = vmatpush1.msra.mxu0 0.0
    %160 = vmatprep.subr.mxu0 0.0
    %161 = vmatpush1.msra.mxu0 0.0
    %162 = vmatprep.subr.mxu0 0.0
    %163 = vmatpush1.msra.mxu0 0.0
    %164 = vmatprep.subr.mxu0 0.0
    %165 = vmatpush1.msra.mxu0 0.0
    %166 = vmatprep.subr.mxu0 0.0
    %167 = vmatpush1.msra.mxu0 0.0
    %168 = vmatprep.subr.mxu0 0.0
    %169 = vmatpush1.msra.mxu0 0.0
    %170 = vmatprep.subr.mxu0 0.0
    %171 = vmatpush1.msra.mxu0 0.0
    %172 = vmatprep.subr.mxu0 0.0
    %173 = vmatpush1.msra.mxu0 0.0
    %174 = vmatprep.subr.mxu0 0.0
    %175 = vmatpush1.msra.mxu0 0.0
    %176 = vmatprep.subr.mxu0 0.0
    %177 = vmatpush1.msra.mxu0 0.0
    %178 = vmatprep.subr.mxu0 0.0
    %179 = vmatpush1.msra.mxu0 0.0
    %180 = vmatprep.subr.mxu0 0.0
    %181 = vmatpush1.msra.mxu0 0.0
    %182 = vmatprep.subr.mxu0 0.0
    %183 = vmatpush1.msra.mxu0 0.0
    %184 = vmatprep.subr.mxu0 0.0
    %185 = vmatpush1.msra.mxu0 0.0
    %186 = vmatprep.subr.mxu0 0.0
    %187 = vmatpush1.msra.mxu0 0.0
    %188 = vmatprep.mubr.f32.mxu0 0.0
    %189 = vmatmul.mubr.f32.gmra.mrb[0].mxu0 %v122
    %v190 = vpop.f32.mrb[0].mxu0
    %v191 = vadd.f32 %v118, %v190
    %v192 = vpop.f32.mrb[0].mxu0
    %193 = vdwg.mxu0
    %v194 = vtanh.pop %v191
    %v195 = vld [vmem:[#allocation4] sm:$0xff]
    %v196 = vld [vmem:[#allocation4 + $0x8] sm:$0xff]
    %v197 = vld [vmem:[#allocation4 + $0x10] sm:$0xff]
    %v198 = vld [vmem:[#allocation4 + $0x18] sm:$0xff]
    %v199 = vld [vmem:[#allocation4 + $0x20] sm:$0xff]
    %v200 = vld [vmem:[#allocation4 + $0x28] sm:$0xff]
    %v201 = vld [vmem:[#allocation4 + $0x30] sm:$0xff]
    %v202 = vld [vmem:[#allocation4 + $0x38] sm:$0xff]
    %v203 = vld [vmem:[%s6] sm:$0x1]
    %v205 = vlaneseq
    %v206 = vshrl.u32 %v205, 7
    %v207 = vsub.s32 0, %v206
    %v208 = vrot.slane %v203, %v207
    %v211 = vsel %vm120, %v194, 0
    %213 = vmatprep.subr.mxu0 0.0
    %214 = vmatpush1.msra.mxu0 %v195
    %215 = vmatprep.subr.mxu0 0.0
    %216 = vmatpush1.msra.mxu0 %v196
    %217 = vmatprep.subr.mxu0 0.0
    %218 = vmatpush1.msra.mxu0 %v197
    %219 = vmatprep.subr.mxu0 0.0
    %220 = vmatpush1.msra.mxu0 %v198
    %221 = vmatprep.subr.mxu0 0.0
    %222 = vmatpush1.msra.mxu0 %v199
    %223 = vmatprep.subr.mxu0 0.0
    %224 = vmatpush1.msra.mxu0 %v200
    %225 = vmatprep.subr.mxu0 0.0
    %226 = vmatpush1.msra.mxu0 %v201
    %227 = vmatprep.subr.mxu0 0.0
    %228 = vmatpush1.msra.mxu0 %v202
    %229 = vmatprep.subr.mxu0 0.0
    %230 = vmatpush1.msra.mxu0 0.0
    %231 = vmatprep.subr.mxu0 0.0
    %232 = vmatpush1.msra.mxu0 0.0
    %233 = vmatprep.subr.mxu0 0.0
    %234 = vmatpush1.msra.mxu0 0.0
    %235 = vmatprep.subr.mxu0 0.0
    %236 = vmatpush1.msra.mxu0 0.0
    %237 = vmatprep.subr.mxu0 0.0
    %238 = vmatpush1.msra.mxu0 0.0
    %239 = vmatprep.subr.mxu0 0.0
    %240 = vmatpush1.msra.mxu0 0.0
    %241 = vmatprep.subr.mxu0 0.0
    %242 = vmatpush1.msra.mxu0 0.0
    %243 = vmatprep.subr.mxu0 0.0
    %244 = vmatpush1.msra.mxu0 0.0
    %245 = vmatprep.subr.mxu0 0.0
    %246 = vmatpush1.msra.mxu0 0.0
    %247 = vmatprep.subr.mxu0 0.0
    %248 = vmatpush1.msra.mxu0 0.0
    %249 = vmatprep.subr.mxu0 0.0
    %250 = vmatpush1.msra.mxu0 0.0
    %251 = vmatprep.subr.mxu0 0.0
    %252 = vmatpush1.msra.mxu0 0.0
    %253 = vmatprep.subr.mxu0 0.0
    %254 = vmatpush1.msra.mxu0 0.0
    %255 = vmatprep.subr.mxu0 0.0
    %256 = vmatpush1.msra.mxu0 0.0
    %257 = vmatprep.subr.mxu0 0.0
    %258 = vmatpush1.msra.mxu0 0.0
    %259 = vmatprep.subr.mxu0 0.0
    %260 = vmatpush1.msra.mxu0 0.0
    %261 = vmatprep.subr.mxu0 0.0
    %262 = vmatpush1.msra.mxu0 0.0
    %263 = vmatprep.subr.mxu0 0.0
    %264 = vmatpush1.msra.mxu0 0.0
    %265 = vmatprep.subr.mxu0 0.0
    %266 = vmatpush1.msra.mxu0 0.0
    %267 = vmatprep.subr.mxu0 0.0
    %268 = vmatpush1.msra.mxu0 0.0
    %269 = vmatprep.subr.mxu0 0.0
    %270 = vmatpush1.msra.mxu0 0.0
    %271 = vmatprep.subr.mxu0 0.0
    %272 = vmatpush1.msra.mxu0 0.0
    %273 = vmatprep.subr.mxu0 0.0
    %274 = vmatpush1.msra.mxu0 0.0
    %275 = vmatprep.subr.mxu0 0.0
    %276 = vmatpush1.msra.mxu0 0.0
    %277 = vmatprep.mubr.f32.mxu0 0.0
    %278 = vmatmul.mubr.f32.gmra.mrb[0].mxu0 %v211
    %v279 = vpop.f32.mrb[0].mxu0
    %v280 = vadd.f32 %v208, %v279
    %v281 = vpop.f32.mrb[0].mxu0
    %282 = vdwg.mxu0
    %283 = vst [vmem:[%s7] sm:$0xff] %v280
    // Predicated region
    $region38: #{actor_critic_forward.1} parent=1 // pred_check
      _
    $region39: #{actor_critic_forward.1} parent=1 // pred_check_branch
      %285 = sbr.rel (0) target = $region41
    $region40: #{actor_critic_forward.1} parent=1 // pred_region
      _
    $region41: #{actor_critic_forward.1} parent=1 // pred_fallthru
      _
    // Predicated region
    $region42: #{actor_critic_forward.1} parent=1 // pred_check
      _
    $region43: #{actor_critic_forward.1} parent=1 // pred_check_branch
      %287 = sbr.rel (0) target = $region45
    $region44: #{actor_critic_forward.1} parent=1 // pred_region
      _
    $region45: #{actor_critic_forward.1} parent=1 // pred_fallthru
      _
    %288 = vsyncpa [#allocation3], 1
    %289 = vsyncpa [#allocation5], 1

</llo_original>
